<compile_context>
chip_gen: v7x
topology: tpu7x:2x2x1
jax: 0.10.0
libtpu: 0.0.40
codegen_flags: <defaults>
</compile_context>

<pallas_src>
import jax
import jax.numpy as jnp
from jax import lax
from jax.experimental import pallas as pl
from jax.experimental.pallas import tpu as pltpu

# --- config implied by the GraphGym layer (synthetic, deterministic) ---
DIM_IN = 8        # layer_config.dim_in
DIM_OUT = 8       # layer_config.dim_out (per-head out channels)
HEADS = 2         # cfg.gnn.att_heads
EDGE_DIM = 4      # cfg.dataset.edge_dim
NEG_SLOPE = 0.2   # GATv2Conv default negative_slope
N_NODES = 16
N_EDGES = 32
HC = HEADS * DIM_OUT
FEAT_PAD = 16     # DIM_IN + 1 (bias col) + EDGE_DIM = 13, padded to 16 (zero rows/cols)
# cfg.gnn.att_concat_proj = True  -> concat heads, then Linear(H*C -> C); bias = True

# --- 8-row-aligned offsets inside the prepacked parameter slab (single VMEM input) ---
ROW_WBIG = 0    # [FEAT_PAD, 2*HC]  rows 0..7: [w_l|w_r], row 8: [b_l|b_r], rows 9..12: [w_e|0]
ROW_ATT = 16    # [HC, HEADS]       block-diag attention weights
ROW_EXP = 32    # [HEADS, HC]       head -> channel-block expansion (0/1)
ROW_WP = 40     # [HC, DIM_OUT]     concat projection
ROW_BO = 56     # [1, DIM_OUT]      folded bias (gat_bias @ w_proj + b_proj)
SLAB_ROWS = 64
SLAB_COLS = 128


def gatv2_kernel(idx_ref, xstack_ref, pslab_ref, out_ref):
    f32 = jnp.float32
    H, C = HEADS, DIM_OUT

    E2 = idx_ref.shape[0]            # 2 * E (src indices stacked over tgt indices)
    E = E2 // 2
    N = xstack_ref.shape[0] - E      # node rows of the stacked LHS

    # --- unpack parameter slab (all row starts are sublane-tile aligned) ---
    w_big = pslab_ref[ROW_WBIG:ROW_WBIG + FEAT_PAD, 0:2 * HC]   # [16, 2HC]
    att_bd = pslab_ref[ROW_ATT:ROW_ATT + HC, 0:H]               # [HC, H]
    expand = pslab_ref[ROW_EXP:ROW_EXP + H, 0:HC]               # [H, HC]
    w_proj = pslab_ref[ROW_WP:ROW_WP + HC, 0:C]                 # [HC, C]
    b_out = pslab_ref[ROW_BO:ROW_BO + 1, 0:C]                   # [1, C]

    # --- fused node + edge linear in ONE matmul ---
    # rows :N  -> [x@w_l + b_l | x@w_r + b_r]   (node features, bias via ones column)
    # rows N:  -> [edge_attr @ w_e | 0]         (edge features, no bias)
    y = jnp.dot(xstack_ref[...], w_big, preferred_element_type=f32)   # [N+E, 2HC]
    xlr = y[:N, :]                                                    # [N, 2HC]
    e_f = y[N:, :HC]                                                  # [E, HC]

    # --- in-kernel one-hot gather/scatter matrix from the index vector (no [2E,N] DMA) ---
    idx = idx_ref[...]                                                # [2E, 1] int32
    oh = (lax.broadcasted_iota(jnp.int32, (E2, N), 1) == idx).astype(f32)   # [2E, N]
    T = oh[E:, :]                                                     # [E, N] target one-hot
    Tt = T.T                                                          # [N, E] scatter matrix

    # single fused endpoint gather: src rows pick x_l, tgt rows pick x_r
    g = jnp.dot(oh, xlr, preferred_element_type=f32)                  # [2E, 2HC]
    xl_e = g[:E, :HC]                                                 # x_l[src] (+ b_l)
    xr_e = g[E:, HC:]                                                 # x_r[tgt] (+ b_r)

    z = xl_e + xr_e + e_f
    z = jnp.where(z > 0, z, NEG_SLOPE * z)                            # LeakyReLU(0.2)

    # per-head attention logits: [E, HC] @ [HC, H] -> [E, H]
    logits = jnp.dot(z, att_bd, preferred_element_type=f32)

    # segment softmax with a per-head GLOBAL max (cancels exactly in numer/denom).
    # Denominator clamped so an all-underflowed segment cannot yield inf/NaN.
    m = jnp.max(logits, axis=0, keepdims=True)                        # [1, H]
    numer = jnp.exp(logits - m)                                       # [E, H]
    denom = jnp.dot(Tt, numer, preferred_element_type=f32)            # [N, H] per-target sums
    edge_den = jnp.dot(T, denom, preferred_element_type=f32)          # [E, H] back on edges
    alpha = numer / jnp.maximum(edge_den, jnp.finfo(jnp.float32).tiny)  # exact divide

    # head -> channel-block expansion (prepacked 0/1 matrix from the slab)
    alpha_full = jnp.dot(alpha, expand, preferred_element_type=f32)   # [E, HC]

    msg = xl_e * alpha_full                                           # [E, HC]
    out_nodes = jnp.dot(Tt, msg, preferred_element_type=f32)          # [N, HC] scatter-add

    # concat projection; GAT bias and proj bias folded into b_out at prepack time
    out_ref[...] = jnp.dot(out_nodes, w_proj, preferred_element_type=f32) + b_out


def _add_self_loops(src, tgt, edge_attr, num_nodes):
    """GATv2Conv default: add_self_loops=True with fill_value='mean' for edge_attr."""
    E = src.shape[0]
    sums = jax.ops.segment_sum(edge_attr, tgt, num_segments=num_nodes)
    cnts = jax.ops.segment_sum(jnp.ones((E,), jnp.float32), tgt, num_segments=num_nodes)
    loop_attr = sums / jnp.maximum(cnts, 1.0)[:, None]
    loop_idx = jnp.arange(num_nodes, dtype=src.dtype)
    return (jnp.concatenate([src, loop_idx]),
            jnp.concatenate([tgt, loop_idx]),
            jnp.concatenate([edge_attr, loop_attr], axis=0))


def prepack_params(params):
    """One-time parameter packing (init-time, NOT on the per-call launch path)."""
    f32 = jnp.float32
    H, C = HEADS, DIM_OUT

    # [16, 2HC]: rows 0..7 = [w_l|w_r], row 8 = [b_l|b_r], rows 9..12 = [w_e|0], rest 0
    w_big = jnp.zeros((FEAT_PAD, 2 * HC), f32)
    w_big = w_big.at[:DIM_IN, :HC].set(params['w_l'])
    w_big = w_big.at[:DIM_IN, HC:].set(params['w_r'])
    w_big = w_big.at[DIM_IN, :HC].set(params['b_l'])
    w_big = w_big.at[DIM_IN, HC:].set(params['b_r'])
    w_big = w_big.at[DIM_IN + 1:DIM_IN + 1 + EDGE_DIM, :HC].set(params['w_e'])

    # block-diagonal attention weights: att_bd[h*C + c, h] = att[h, c]
    att_bd = (jnp.eye(H, dtype=f32)[:, None, :] * params['att'][:, :, None]).reshape(HC, H)
    # head -> channel-block expansion: expand[h, h*C + c] = 1
    expand = (jnp.arange(HC)[None, :] // C == jnp.arange(H)[:, None]).astype(f32)
    # fold GAT bias through the concat projection
    b_out = (params['bias'] @ params['w_proj'] + params['b_proj'])[None, :]

    slab = jnp.zeros((SLAB_ROWS, SLAB_COLS), f32)
    for r0, mat in ((ROW_WBIG, w_big), (ROW_ATT, att_bd), (ROW_EXP, expand),
                    (ROW_WP, params['w_proj']), (ROW_BO, b_out)):
        slab = slab.at[r0:r0 + mat.shape[0], 0:mat.shape[1]].set(mat)
    return slab


@jax.jit
def gatev2conv_forward(x, src, tgt, edge_attr, slab):
    N = x.shape[0]
    src_f, tgt_f, ea_f = _add_self_loops(src, tgt, edge_attr, N)
    E_full = src_f.shape[0]

    # stacked endpoint indices -> the kernel builds the one-hot gather/scatter from these
    idx = jnp.concatenate([src_f, tgt_f]).astype(jnp.int32)[:, None]            # [2E, 1]

    # stacked LHS for the fused node+edge linear: node rows (x | 1 | 0), edge rows (0 | 0 | ea)
    x_stack = jnp.zeros((N + E_full, FEAT_PAD), jnp.float32)
    x_stack = x_stack.at[:N, :DIM_IN].set(x)
    x_stack = x_stack.at[:N, DIM_IN].set(1.0)
    x_stack = x_stack.at[N:, DIM_IN + 1:DIM_IN + 1 + EDGE_DIM].set(ea_f)

    vmem = pl.BlockSpec(memory_space=pltpu.MemorySpace.VMEM)
    return pl.pallas_call(
        gatv2_kernel,
        out_shape=jax.ShapeDtypeStruct((N, DIM_OUT), jnp.float32),
        in_specs=[vmem, vmem, vmem],
        out_specs=vmem,
    )(idx, x_stack, slab)


def gatev2conv_reference(x, src, tgt, edge_attr, params):
    """Pure-JAX reference following torch_geometric GATv2Conv semantics (eval mode)."""
    N = x.shape[0]
    H, C = HEADS, DIM_OUT
    src_f, tgt_f, ea_f = _add_self_loops(src, tgt, edge_attr, N)

    x_l = x @ params['w_l'] + params['b_l']
    x_r = x @ params['w_r'] + params['b_r']
    e_f = ea_f @ params['w_e']

    z = x_l[src_f] + x_r[tgt_f] + e_f
    z = jnp.where(z > 0, z, NEG_SLOPE * z)
    zz = z.reshape(-1, H, C)
    logits = (zz * params['att'][None]).sum(-1)                       # [E, H]

    node_max = jax.ops.segment_max(logits, tgt_f, num_segments=N)
    numer = jnp.exp(logits - node_max[tgt_f])
    denom = jax.ops.segment_sum(numer, tgt_f, num_segments=N)
    alpha = numer / denom[tgt_f]

    msg = x_l[src_f].reshape(-1, H, C) * alpha[:, :, None]
    out = jax.ops.segment_sum(msg, tgt_f, num_segments=N).reshape(N, H * C)
    out = out + params['bias']
    return out @ params['w_proj'] + params['b_proj']


def _glorot(key, shape):
    limit = (6.0 / (shape[0] + shape[1])) ** 0.5
    return jax.random.uniform(key, shape, jnp.float32, -limit, limit)


def init_params(key):
    H, C = HEADS, DIM_OUT
    ks = jax.random.split(key, 10)
    return {
        'w_l': _glorot(ks[0], (DIM_IN, H * C)),
        'b_l': 0.1 * jax.random.normal(ks[1], (H * C,), jnp.float32),
        'w_r': _glorot(ks[2], (DIM_IN, H * C)),
        'b_r': 0.1 * jax.random.normal(ks[3], (H * C,), jnp.float32),
        'w_e': _glorot(ks[4], (EDGE_DIM, H * C)),
        'att': _glorot(ks[5], (H, C)),
        'bias': 0.1 * jax.random.normal(ks[6], (H * C,), jnp.float32),
        'w_proj': _glorot(ks[7], (H * C, C)),
        'b_proj': 0.1 * jax.random.normal(ks[8], (C,), jnp.float32),
    }


if __name__ == "__main__":
    key = jax.random.PRNGKey(0)
    k_x, k_s, k_t, k_e, k_p = jax.random.split(key, 5)

    x = jax.random.normal(k_x, (N_NODES, DIM_IN), jnp.float32)
    src = jax.random.randint(k_s, (N_EDGES,), 0, N_NODES)
    tgt = jax.random.randint(k_t, (N_EDGES,), 0, N_NODES)
    edge_attr = jax.random.normal(k_e, (N_EDGES, EDGE_DIM), jnp.float32)
    params = init_params(k_p)

    # parameters packed once at init (off the per-call launch path)
    slab = jax.block_until_ready(prepack_params(params))

    out = gatev2conv_forward(x, src, tgt, edge_attr, slab)
    out = jax.block_until_ready(out)

    ref = gatev2conv_reference(x, src, tgt, edge_attr, params)
    assert out.shape == (N_NODES, DIM_OUT)
    # tolerance tightened vs. previous version: softmax now uses an exact divide;
    # remaining delta is MXU f32 accumulation-order vs. the segment-op reference.
    assert jnp.allclose(out, ref, atol=2e-3, rtol=2e-3), (
        f"max abs err {jnp.max(jnp.abs(out - ref))}")

    print("KERNEL_OK")
</pallas_src>

<mosaic_0001>
module attributes {stable_mosaic.version = 11 : i64} {
  func.func private @main(%arg0: i32) attributes {dimension_semantics = [#tpu.dimension_semantics<core_parallel>], iteration_bounds = array<i64: 2>, tpu.core_type = #tpu.core_type<sc_scalar_subcore>, window_params = []} {
    return
  }
}

module attributes {stable_mosaic.version = 11 : i64} {
  func.func private @main(%arg0: i32) attributes {dimension_semantics = [#tpu.dimension_semantics<core_parallel>], iteration_bounds = array<i64: 2>, tpu.core_type = #tpu.core_type<sc_scalar_subcore>, window_params = []} {
    return
  }
}

module attributes {stable_mosaic.version = 11 : i64} {
  func.func @gatv2_kernel(%arg0: memref<96x1xi32, #tpu.memory_space<vmem>>, %arg1: memref<64x16xf32, #tpu.memory_space<vmem>>, %arg2: memref<64x128xf32, #tpu.memory_space<vmem>>, %arg3: memref<16x8xf32, #tpu.memory_space<vmem>>) attributes {dimension_semantics = [], scalar_prefetch = 0 : i64, scratch_operands = 0 : i64, tpu.core_type = #tpu.core_type<tc>} {
    %c0 = arith.constant 0 : index
    %c0_0 = arith.constant 0 : index
    %0 = vector.load %arg2[%c0, %c0_0] : memref<64x128xf32, #tpu.memory_space<vmem>>, vector<16x32xf32>
    %c16 = arith.constant 16 : index
    %c0_1 = arith.constant 0 : index
    %1 = vector.load %arg2[%c16, %c0_1] : memref<64x128xf32, #tpu.memory_space<vmem>>, vector<16x2xf32>
    %c32 = arith.constant 32 : index
    %c0_2 = arith.constant 0 : index
    %2 = vector.load %arg2[%c32, %c0_2] : memref<64x128xf32, #tpu.memory_space<vmem>>, vector<2x16xf32>
    %c40 = arith.constant 40 : index
    %c0_3 = arith.constant 0 : index
    %3 = vector.load %arg2[%c40, %c0_3] : memref<64x128xf32, #tpu.memory_space<vmem>>, vector<16x8xf32>
    %c56 = arith.constant 56 : index
    %c0_4 = arith.constant 0 : index
    %4 = vector.load %arg2[%c56, %c0_4] : memref<64x128xf32, #tpu.memory_space<vmem>>, vector<1x8xf32>
    %c0_5 = arith.constant 0 : index
    %c0_6 = arith.constant 0 : index
    %5 = vector.load %arg1[%c0_5, %c0_6] : memref<64x16xf32, #tpu.memory_space<vmem>>, vector<64x16xf32>
    %cst = arith.constant dense<0.000000e+00> : vector<64x32xf32>
    %6 = tpu.matmul %5, %0, %cst {dimension_numbers = #tpu.dot_dimension_numbers<[1], [0], [0], [1], [0, 0, 1, 1], [], []>} : vector<64x16xf32>, vector<16x32xf32>, vector<64x32xf32> -> vector<64x32xf32>
    %7 = vector.extract_strided_slice %6 {offsets = [0, 0], sizes = [16, 32], strides = [1, 1]} : vector<64x32xf32> to vector<16x32xf32>
    %8 = vector.extract_strided_slice %6 {offsets = [16, 0], sizes = [48, 16], strides = [1, 1]} : vector<64x32xf32> to vector<48x16xf32>
    %c0_7 = arith.constant 0 : index
    %c0_8 = arith.constant 0 : index
    %9 = vector.load %arg0[%c0_7, %c0_8] : memref<96x1xi32, #tpu.memory_space<vmem>>, vector<96x1xi32>
    %10 = tpu.iota {dimensions = array<i32: 1>} : vector<96x16xi32>
    %11 = vector.broadcast %9 : vector<96x1xi32> to vector<96x16xi32>
    %12 = arith.cmpi eq, %10, %11 : vector<96x16xi32>
    %13 = arith.extui %12 : vector<96x16xi1> to vector<96x16xi32>
    %14 = arith.sitofp %13 : vector<96x16xi32> to vector<96x16xf32>
    %15 = vector.extract_strided_slice %14 {offsets = [48, 0], sizes = [48, 16], strides = [1, 1]} : vector<96x16xf32> to vector<48x16xf32>
    %16 = tpu.transpose %15, [1, 0] : vector<48x16xf32> -> vector<16x48xf32>
    %cst_9 = arith.constant dense<0.000000e+00> : vector<96x32xf32>
    %17 = tpu.matmul %14, %7, %cst_9 {dimension_numbers = #tpu.dot_dimension_numbers<[1], [0], [0], [1], [0, 0, 1, 1], [], []>} : vector<96x16xf32>, vector<16x32xf32>, vector<96x32xf32> -> vector<96x32xf32>
    %18 = vector.extract_strided_slice %17 {offsets = [0, 0], sizes = [48, 16], strides = [1, 1]} : vector<96x32xf32> to vector<48x16xf32>
    %19 = vector.extract_strided_slice %17 {offsets = [48, 16], sizes = [48, 16], strides = [1, 1]} : vector<96x32xf32> to vector<48x16xf32>
    %20 = arith.addf %18, %19 : vector<48x16xf32>
    %21 = arith.addf %20, %8 : vector<48x16xf32>
    %cst_10 = arith.constant 0.000000e+00 : f32
    %22 = vector.broadcast %cst_10 : f32 to vector<48x16xf32>
    %23 = arith.cmpf ogt, %21, %22 : vector<48x16xf32>
    %cst_11 = arith.constant 2.000000e-01 : f32
    %24 = vector.broadcast %cst_11 : f32 to vector<48x16xf32>
    %25 = arith.mulf %24, %21 : vector<48x16xf32>
    %26 = arith.select %23, %21, %25 : vector<48x16xi1>, vector<48x16xf32>
    %cst_12 = arith.constant dense<0.000000e+00> : vector<48x2xf32>
    %27 = tpu.matmul %26, %1, %cst_12 {dimension_numbers = #tpu.dot_dimension_numbers<[1], [0], [0], [1], [0, 0, 1, 1], [], []>} : vector<48x16xf32>, vector<16x2xf32>, vector<48x2xf32> -> vector<48x2xf32>
    %cst_13 = arith.constant dense<0xFF800000> : vector<2xf32>
    %28 = vector.multi_reduction <maximumf>, %27, %cst_13 [0] : vector<48x2xf32> to vector<2xf32>
    %29 = vector.shape_cast %28 : vector<2xf32> to vector<1x2xf32>
    %30 = vector.broadcast %29 : vector<1x2xf32> to vector<48x2xf32>
    %31 = arith.subf %27, %30 : vector<48x2xf32>
    %32 = math.exp %31 : vector<48x2xf32>
    %cst_14 = arith.constant dense<0.000000e+00> : vector<16x2xf32>
    %33 = tpu.matmul %16, %32, %cst_14 {dimension_numbers = #tpu.dot_dimension_numbers<[1], [0], [0], [1], [0, 0, 1, 1], [], []>} : vector<16x48xf32>, vector<48x2xf32>, vector<16x2xf32> -> vector<16x2xf32>
    %cst_15 = arith.constant dense<0.000000e+00> : vector<48x2xf32>
    %34 = tpu.matmul %15, %33, %cst_15 {dimension_numbers = #tpu.dot_dimension_numbers<[1], [0], [0], [1], [0, 0, 1, 1], [], []>} : vector<48x16xf32>, vector<16x2xf32>, vector<48x2xf32> -> vector<48x2xf32>
    %cst_16 = arith.constant 1.17549435E-38 : f32
    %35 = vector.broadcast %cst_16 : f32 to vector<48x2xf32>
    %36 = arith.maximumf %34, %35 : vector<48x2xf32>
    %37 = arith.divf %32, %36 : vector<48x2xf32>
    %cst_17 = arith.constant dense<0.000000e+00> : vector<48x16xf32>
    %38 = tpu.matmul %37, %2, %cst_17 {dimension_numbers = #tpu.dot_dimension_numbers<[1], [0], [0], [1], [0, 0, 1, 1], [], []>} : vector<48x2xf32>, vector<2x16xf32>, vector<48x16xf32> -> vector<48x16xf32>
    %39 = arith.mulf %18, %38 : vector<48x16xf32>
    %cst_18 = arith.constant dense<0.000000e+00> : vector<16x16xf32>
    %40 = tpu.matmul %16, %39, %cst_18 {dimension_numbers = #tpu.dot_dimension_numbers<[1], [0], [0], [1], [0, 0, 1, 1], [], []>} : vector<16x48xf32>, vector<48x16xf32>, vector<16x16xf32> -> vector<16x16xf32>
    %cst_19 = arith.constant dense<0.000000e+00> : vector<16x8xf32>
    %41 = tpu.matmul %40, %3, %cst_19 {dimension_numbers = #tpu.dot_dimension_numbers<[1], [0], [0], [1], [0, 0, 1, 1], [], []>} : vector<16x16xf32>, vector<16x8xf32>, vector<16x8xf32> -> vector<16x8xf32>
    %42 = vector.broadcast %4 : vector<1x8xf32> to vector<16x8xf32>
    %43 = arith.addf %41, %42 : vector<16x8xf32>
    %c0_20 = arith.constant 0 : index
    %c0_21 = arith.constant 0 : index
    %44 = vector.load %arg3[%c0_20, %c0_21] : memref<16x8xf32, #tpu.memory_space<vmem>>, vector<16x8xf32>
    tpu.vector_store %arg3[%c0_20, %c0_21], %43 {strides = array<i32>} : memref<16x8xf32, #tpu.memory_space<vmem>>, vector<16x8xf32>,
    return
  }
}

</mosaic_0001>

<llo_original>
// kernel: gatev2conv_forward.1
$region0: #{gatev2conv_forward.1}
  #allocation0 [shape = 'u32[]', space=smem, size = 0x4, offset = 0x4, fixed_abs, tag = 'smem constant byte address 0x4 - core index']
  #allocation1 [shape = 'u32[144,128]{1,0:T(1,128)}', space=vmem, size = 0x12000, scoped, tag = 'internal scratch']
  %s0 = inlined_call_operand.vmem [shape: s32[96,1], index: 0, kind: input, shape index: {}]
  %s1 = inlined_call_operand.vmem [shape: f32[64,16], index: 1, kind: input, shape index: {}]
  %s2 = inlined_call_operand.vmem [shape: f32[64,128], index: 2, kind: input, shape index: {}]
  %s3 = inlined_call_operand.vmem [shape: f32[16,8], index: 3, kind: output, shape index: {}]
  %s4 = sld [smem:[#allocation0]]
  $region22: #{gatev2conv_forward.1} parent=0
    _
  %s6 = ssub.s32 1, %s4
  %s7 = scalar_select 0, %s6, %s4
  // Predicated region
  $region2: #{gatev2conv_forward.1} parent=0 // pred_check
    _
  $region3: #{gatev2conv_forward.1} parent=0 // pred_check_branch
    %9 = sbr.rel (0) target = $region5
  $region4: #{gatev2conv_forward.1} parent=0 // pred_region
    _
  $region5: #{gatev2conv_forward.1} parent=0 // pred_fallthru
    _
  // Predicated region
  $region6: #{gatev2conv_forward.1} parent=0 // pred_check
    _
  $region7: #{gatev2conv_forward.1} parent=0 // pred_check_branch
    %11 = sbr.rel (0) target = $region9
  $region8: #{gatev2conv_forward.1} parent=0 // pred_region
    _
  $region9: #{gatev2conv_forward.1} parent=0 // pred_fallthru
    _
  // Predicated region
  $region10: #{gatev2conv_forward.1} parent=0 // pred_check
    _
  $region11: #{gatev2conv_forward.1} parent=0 // pred_check_branch
    %13 = sbr.rel (0) target = $region13
  $region12: #{gatev2conv_forward.1} parent=0 // pred_region
    _
  $region13: #{gatev2conv_forward.1} parent=0 // pred_fallthru
    _
  %v14 = vld [vmem:[%s2] sm:$0xff]
  %v15 = vld [vmem:[%s2 + $0x8] sm:$0xff]
  %v16 = vld [vmem:[%s2 + $0x10] sm:$0xff]
  %v17 = vld [vmem:[%s2 + $0x18] sm:$0xff]
  %v18 = vld [vmem:[%s2 + $0x20] sm:$0x3]
  %v19 = vld [vmem:[%s2 + $0x28] sm:$0xff]
  %v20 = vld [vmem:[%s2 + $0x30] sm:$0xff]
  %v21 = vld [vmem:[%s2 + $0x38] sm:$0x1]
  %v22 = vld [vmem:[%s1] sm:$0xff]
  %v23 = vld [vmem:[%s1 + $0x8] sm:$0xff]
  %v24 = vld [vmem:[%s1 + $0x10] sm:$0xff]
  %v25 = vld [vmem:[%s1 + $0x18] sm:$0xff]
  %v26 = vld [vmem:[%s1 + $0x20] sm:$0xff]
  %v27 = vld [vmem:[%s1 + $0x28] sm:$0xff]
  %v28 = vld [vmem:[%s1 + $0x30] sm:$0xff]
  %v29 = vld [vmem:[%s1 + $0x38] sm:$0xff]
  %vm30 = vcmask 130048
  %v32 = vsel %vm30, %v22, 0
  %v35 = vsel %vm30, %v23, 0
  %v38 = vsel %vm30, %v24, 0
  %v41 = vsel %vm30, %v25, 0
  %v44 = vsel %vm30, %v26, 0
  %v47 = vsel %vm30, %v27, 0
  %v50 = vsel %vm30, %v28, 0
  %v53 = vsel %vm30, %v29, 0
  %55 = vmatprep.subr.mxu0 0.0
  %56 = vmatpush1.msra.mxu0 %v14
  %57 = vmatprep.subr.mxu0 0.0
  %58 = vmatpush1.msra.mxu0 %v15
  %59 = vmatprep.subr.mxu0 0.0
  %60 = vmatpush1.msra.mxu0 0.0
  %61 = vmatprep.subr.mxu0 0.0
  %62 = vmatpush1.msra.mxu0 0.0
  %63 = vmatprep.subr.mxu0 0.0
  %64 = vmatpush1.msra.mxu0 0.0
  %65 = vmatprep.subr.mxu0 0.0
  %66 = vmatpush1.msra.mxu0 0.0
  %67 = vmatprep.subr.mxu0 0.0
  %68 = vmatpush1.msra.mxu0 0.0
  %69 = vmatprep.subr.mxu0 0.0
  %70 = vmatpush1.msra.mxu0 0.0
  %71 = vmatprep.subr.mxu0 0.0
  %72 = vmatpush1.msra.mxu0 0.0
  %73 = vmatprep.subr.mxu0 0.0
  %74 = vmatpush1.msra.mxu0 0.0
  %75 = vmatprep.subr.mxu0 0.0
  %76 = vmatpush1.msra.mxu0 0.0
  %77 = vmatprep.subr.mxu0 0.0
  %78 = vmatpush1.msra.mxu0 0.0
  %79 = vmatprep.subr.mxu0 0.0
  %80 = vmatpush1.msra.mxu0 0.0
  %81 = vmatprep.subr.mxu0 0.0
  %82 = vmatpush1.msra.mxu0 0.0
  %83 = vmatprep.subr.mxu0 0.0
  %84 = vmatpush1.msra.mxu0 0.0
  %85 = vmatprep.subr.mxu0 0.0
  %86 = vmatpush1.msra.mxu0 0.0
  %87 = vmatprep.subr.mxu0 0.0
  %88 = vmatpush1.msra.mxu0 0.0
  %89 = vmatprep.subr.mxu0 0.0
  %90 = vmatpush1.msra.mxu0 0.0
  %91 = vmatprep.subr.mxu0 0.0
  %92 = vmatpush1.msra.mxu0 0.0
  %93 = vmatprep.subr.mxu0 0.0
  %94 = vmatpush1.msra.mxu0 0.0
  %95 = vmatprep.subr.mxu0 0.0
  %96 = vmatpush1.msra.mxu0 0.0
  %97 = vmatprep.subr.mxu0 0.0
  %98 = vmatpush1.msra.mxu0 0.0
  %99 = vmatprep.subr.mxu0 0.0
  %100 = vmatpush1.msra.mxu0 0.0
  %101 = vmatprep.subr.mxu0 0.0
  %102 = vmatpush1.msra.mxu0 0.0
  %103 = vmatprep.subr.mxu0 0.0
  %104 = vmatpush1.msra.mxu0 0.0
  %105 = vmatprep.subr.mxu0 0.0
  %106 = vmatpush1.msra.mxu0 0.0
  %107 = vmatprep.subr.mxu0 0.0
  %108 = vmatpush1.msra.mxu0 0.0
  %109 = vmatprep.subr.mxu0 0.0
  %110 = vmatpush1.msra.mxu0 0.0
  %111 = vmatprep.subr.mxu0 0.0
  %112 = vmatpush1.msra.mxu0 0.0
  %113 = vmatprep.subr.mxu0 0.0
  %114 = vmatpush1.msra.mxu0 0.0
  %115 = vmatprep.subr.mxu0 0.0
  %116 = vmatpush1.msra.mxu0 0.0
  %117 = vmatprep.subr.mxu0 0.0
  %118 = vmatpush1.msra.mxu0 0.0
  %119 = vmatprep.mubr.f32.mxu0 0.0
  %120 = vmatmul.mubr.f32.gmra.mrb[0].mxu0 %v32
  %v121 = vpop.f32.mrb[0].mxu0
  %v122 = vadd.f32 0.0, %v121
  %v123 = vpop.f32.mrb[0].mxu0
  %124 = vmatprep.mubr.f32.mxu0 0.0
  %125 = vmatmul.mubr.f32.gmra.mrb[0].mxu0 %v35
  %v126 = vpop.f32.mrb[0].mxu0
  %v127 = vadd.f32 0.0, %v126
  %v128 = vpop.f32.mrb[0].mxu0
  %129 = vmatprep.mubr.f32.mxu0 0.0
  %130 = vmatmul.mubr.f32.gmra.mrb[0].mxu0 %v38
  %v131 = vpop.f32.mrb[0].mxu0
  %v132 = vadd.f32 0.0, %v131
  %v133 = vpop.f32.mrb[0].mxu0
  %134 = vmatprep.mubr.f32.mxu0 0.0
  %135 = vmatmul.mubr.f32.gmra.mrb[0].mxu0 %v41
  %v136 = vpop.f32.mrb[0].mxu0
  %v137 = vadd.f32 0.0, %v136
  %v138 = vpop.f32.mrb[0].mxu0
  %139 = vmatprep.mubr.f32.mxu0 0.0
  %140 = vmatmul.mubr.f32.gmra.mrb[0].mxu0 %v44
  %v141 = vpop.f32.mrb[0].mxu0
  %v142 = vadd.f32 0.0, %v141
  %v143 = vpop.f32.mrb[0].mxu0
  %144 = vmatprep.mubr.f32.mxu0 0.0
  %145 = vmatmul.mubr.f32.gmra.mrb[0].mxu0 %v47
  %v146 = vpop.f32.mrb[0].mxu0
  %v147 = vadd.f32 0.0, %v146
  %v148 = vpop.f32.mrb[0].mxu0
  %149 = vmatprep.mubr.f32.mxu0 0.0
  %150 = vmatmul.mubr.f32.gmra.mrb[0].mxu0 %v50
  %v151 = vpop.f32.mrb[0].mxu0
  %v152 = vadd.f32 0.0, %v151
  %v153 = vpop.f32.mrb[0].mxu0
  %154 = vmatprep.mubr.f32.mxu0 0.0
  %155 = vmatmul.mubr.f32.gmra.mrb[0].mxu0 %v53
  %v156 = vpop.f32.mrb[0].mxu0
  %v157 = vadd.f32 0.0, %v156
  %v158 = vpop.f32.mrb[0].mxu0
  %159 = vdwg.mxu0
  %v160 = vld [vmem:[%s0] sm:$0xff]
  %v161 = vld [vmem:[%s0 + $0x8] sm:$0xff]
  %v162 = vld [vmem:[%s0 + $0x10] sm:$0xff]
  %v163 = vld [vmem:[%s0 + $0x18] sm:$0xff]
  %v164 = vld [vmem:[%s0 + $0x20] sm:$0xff]
  %v165 = vld [vmem:[%s0 + $0x28] sm:$0xff]
  %v166 = vld [vmem:[%s0 + $0x30] sm:$0xff]
  %v167 = vld [vmem:[%s0 + $0x38] sm:$0xff]
  %v168 = vld [vmem:[%s0 + $0x40] sm:$0xff]
  %v169 = vld [vmem:[%s0 + $0x48] sm:$0xff]
  %v170 = vld [vmem:[%s0 + $0x50] sm:$0xff]
  %v171 = vld [vmem:[%s0 + $0x58] sm:$0xff]
  %v172 = vlaneseq
  %v173 = vand.u32 %v172, 127
  %174 = vset.pattern.permute.xlu0 0
  %175 = vperm.xlu0 %174, %v160
  %v176 = vpop.permute.xlu0 %175
  %177 = vset.pattern.permute.xlu0 0
  %178 = vperm.xlu0 %177, %v161
  %v179 = vpop.permute.xlu0 %178
  %180 = vset.pattern.permute.xlu0 0
  %181 = vperm.xlu0 %180, %v162
  %v182 = vpop.permute.xlu0 %181
  %183 = vset.pattern.permute.xlu0 0
  %184 = vperm.xlu0 %183, %v163
  %v185 = vpop.permute.xlu0 %184
  %186 = vset.pattern.permute.xlu0 0
  %187 = vperm.xlu0 %186, %v164
  %v188 = vpop.permute.xlu0 %187
  %189 = vset.pattern.permute.xlu0 0
  %190 = vperm.xlu0 %189, %v165
  %v191 = vpop.permute.xlu0 %190
  %192 = vset.pattern.permute.xlu0 0
  %193 = vperm.xlu0 %192, %v166
  %v194 = vpop.permute.xlu0 %193
  %195 = vset.pattern.permute.xlu0 0
  %196 = vperm.xlu0 %195, %v167
  %v197 = vpop.permute.xlu0 %196
  %198 = vset.pattern.permute.xlu0 0
  %199 = vperm.xlu0 %198, %v168
  %v200 = vpop.permute.xlu0 %199
  %201 = vset.pattern.permute.xlu0 0
  %202 = vperm.xlu0 %201, %v169
  %v203 = vpop.permute.xlu0 %202
  %204 = vset.pattern.permute.xlu0 0
  %205 = vperm.xlu0 %204, %v170
  %v206 = vpop.permute.xlu0 %205
  %207 = vset.pattern.permute.xlu0 0
  %208 = vperm.xlu0 %207, %v171
  %v209 = vpop.permute.xlu0 %208
  %vm210 = vcmp.eq.s32.totalorder %v173, %v176
  %vm211 = vcmp.eq.s32.totalorder %v173, %v179
  %vm212 = vcmp.eq.s32.totalorder %v173, %v182
  %vm213 = vcmp.eq.s32.totalorder %v173, %v185
  %vm214 = vcmp.eq.s32.totalorder %v173, %v188
  %vm215 = vcmp.eq.s32.totalorder %v173, %v191
  %vm216 = vcmp.eq.s32.totalorder %v173, %v194
  %vm217 = vcmp.eq.s32.totalorder %v173, %v197
  %vm218 = vcmp.eq.s32.totalorder %v173, %v200
  %vm219 = vcmp.eq.s32.totalorder %v173, %v203
  %vm220 = vcmp.eq.s32.totalorder %v173, %v206
  %vm221 = vcmp.eq.s32.totalorder %v173, %v209
  %v222 = vsel %vm210, 1, 0
  %v223 = vsel %vm211, 1, 0
  %v224 = vsel %vm212, 1, 0
  %v225 = vsel %vm213, 1, 0
  %v226 = vsel %vm214, 1, 0
  %v227 = vsel %vm215, 1, 0
  %v228 = vsel %vm216, 1, 0
  %v229 = vsel %vm217, 1, 0
  %v230 = vsel %vm218, 1, 0
  %v231 = vsel %vm219, 1, 0
  %v232 = vsel %vm220, 1, 0
  %v233 = vsel %vm221, 1, 0
  %v234 = vcvt.s32.f32 %v222
  %v235 = vcvt.s32.f32 %v223
  %v236 = vcvt.s32.f32 %v224
  %v237 = vcvt.s32.f32 %v225
  %v238 = vcvt.s32.f32 %v226
  %v239 = vcvt.s32.f32 %v227
  %v240 = vcvt.s32.f32 %v228
  %v241 = vcvt.s32.f32 %v229
  %v242 = vcvt.s32.f32 %v230
  %v243 = vcvt.s32.f32 %v231
  %v244 = vcvt.s32.f32 %v232
  %v245 = vcvt.s32.f32 %v233
  %246 = vxpose.xlu0.b32.start [1/16] %v240, 128
  %247 = vxpose.xlu0.b32.cont [2/16] %v241, 128
  %248 = vxpose.xlu0.b32.cont [3/16] %v242, 128
  %249 = vxpose.xlu0.b32.cont [4/16] %v243, 128
  %250 = vxpose.xlu0.b32.cont [5/16] %v244, 128
  %251 = vxpose.xlu0.b32.cont [6/16] %v245, 128
  %252 = vxpose.xlu0.b32.cont [7/16] 0.0, 128
  %253 = vxpose.xlu0.b32.cont [8/16] 0.0, 128
  %254 = vxpose.xlu0.b32.cont [9/16] 0.0, 128
  %255 = vxpose.xlu0.b32.cont [10/16] 0.0, 128
  %256 = vxpose.xlu0.b32.cont [11/16] 0.0, 128
  %257 = vxpose.xlu0.b32.cont [12/16] 0.0, 128
  %258 = vxpose.xlu0.b32.cont [13/16] 0.0, 128
  %259 = vxpose.xlu0.b32.cont [14/16] 0.0, 128
  %260 = vxpose.xlu0.b32.cont [15/16] 0.0, 128
  %261 = vxpose.xlu0.b32.end [16/16] 0.0, 128
  %v262 = vpop.trf.xlu0
  %v263 = vpop.trf.xlu0
  %v264 = vpop.trf.xlu0
  %v265 = vpop.trf.xlu0
  %v266 = vpop.trf.xlu0
  %v267 = vpop.trf.xlu0
  %v268 = vpop.trf.xlu0
  %v269 = vpop.trf.xlu0
  %v270 = vpop.trf.xlu0
  %v271 = vpop.trf.xlu0
  %v272 = vpop.trf.xlu0
  %v273 = vpop.trf.xlu0
  %v274 = vpop.trf.xlu0
  %v275 = vpop.trf.xlu0
  %v276 = vpop.trf.xlu0
  %v277 = vpop.trf.xlu0
  %v279 = vsel %vm30, %v234, 0
  %v282 = vsel %vm30, %v235, 0
  %v285 = vsel %vm30, %v236, 0
  %v288 = vsel %vm30, %v237, 0
  %v291 = vsel %vm30, %v238, 0
  %v294 = vsel %vm30, %v239, 0
  %v297 = vsel %vm30, %v240, 0
  %v300 = vsel %vm30, %v241, 0
  %v303 = vsel %vm30, %v242, 0
  %v306 = vsel %vm30, %v243, 0
  %v309 = vsel %vm30, %v244, 0
  %v312 = vsel %vm30, %v245, 0
  %314 = vmatprep.subr.mxu0 0.0
  %315 = vmatpush1.msra.mxu0 %v122
  %316 = vmatprep.subr.mxu0 0.0
  %317 = vmatpush1.msra.mxu0 %v127
  %318 = vmatprep.subr.mxu0 0.0
  %319 = vmatpush1.msra.mxu0 0.0
  %320 = vmatprep.subr.mxu0 0.0
  %321 = vmatpush1.msra.mxu0 0.0
  %322 = vmatprep.subr.mxu0 0.0
  %323 = vmatpush1.msra.mxu0 0.0
  %324 = vmatprep.subr.mxu0 0.0
  %325 = vmatpush1.msra.mxu0 0.0
  %326 = vmatprep.subr.mxu0 0.0
  %327 = vmatpush1.msra.mxu0 0.0
  %328 = vmatprep.subr.mxu0 0.0
  %329 = vmatpush1.msra.mxu0 0.0
  %330 = vmatprep.subr.mxu0 0.0
  %331 = vmatpush1.msra.mxu0 0.0
  %332 = vmatprep.subr.mxu0 0.0
  %333 = vmatpush1.msra.mxu0 0.0
  %334 = vmatprep.subr.mxu0 0.0
  %335 = vmatpush1.msra.mxu0 0.0
  %336 = vmatprep.subr.mxu0 0.0
  %337 = vmatpush1.msra.mxu0 0.0
  %338 = vmatprep.subr.mxu0 0.0
  %339 = vmatpush1.msra.mxu0 0.0
  %340 = vmatprep.subr.mxu0 0.0
  %341 = vmatpush1.msra.mxu0 0.0
  %342 = vmatprep.subr.mxu0 0.0
  %343 = vmatpush1.msra.mxu0 0.0
  %344 = vmatprep.subr.mxu0 0.0
  %345 = vmatpush1.msra.mxu0 0.0
  %346 = vmatprep.subr.mxu0 0.0
  %347 = vmatpush1.msra.mxu0 0.0
  %348 = vmatprep.subr.mxu0 0.0
  %349 = vmatpush1.msra.mxu0 0.0
  %350 = vmatprep.subr.mxu0 0.0
  %351 = vmatpush1.msra.mxu0 0.0
  %352 = vmatprep.subr.mxu0 0.0
  %353 = vmatpush1.msra.mxu0 0.0
  %354 = vmatprep.subr.mxu0 0.0
  %355 = vmatpush1.msra.mxu0 0.0
  %356 = vmatprep.subr.mxu0 0.0
  %357 = vmatpush1.msra.mxu0 0.0
  %358 = vmatprep.subr.mxu0 0.0
  %359 = vmatpush1.msra.mxu0 0.0
  %360 = vmatprep.subr.mxu0 0.0
  %361 = vmatpush1.msra.mxu0 0.0
  %362 = vmatprep.subr.mxu0 0.0
  %363 = vmatpush1.msra.mxu0 0.0
  %364 = vmatprep.subr.mxu0 0.0
  %365 = vmatpush1.msra.mxu0 0.0
  %366 = vmatprep.subr.mxu0 0.0
  %367 = vmatpush1.msra.mxu0 0.0
  %368 = vmatprep.subr.mxu0 0.0
  %369 = vmatpush1.msra.mxu0 0.0
  %370 = vmatprep.subr.mxu0 0.0
  %371 = vmatpush1.msra.mxu0 0.0
  %372 = vmatprep.subr.mxu0 0.0
  %373 = vmatpush1.msra.mxu0 0.0
  %374 = vmatprep.subr.mxu0 0.0
  %375 = vmatpush1.msra.mxu0 0.0
  %376 = vmatprep.subr.mxu0 0.0
  %377 = vmatpush1.msra.mxu0 0.0
  %378 = vmatprep.mubr.f32.mxu0 0.0
  %379 = vmatmul.mubr.f32.gmra.mrb[0].mxu0 %v279
  %v380 = vpop.f32.mrb[0].mxu0
  %v381 = vadd.f32 0.0, %v380
  %v382 = vpop.f32.mrb[0].mxu0
  %383 = vmatprep.mubr.f32.mxu0 0.0
  %384 = vmatmul.mubr.f32.gmra.mrb[0].mxu0 %v282
  %v385 = vpop.f32.mrb[0].mxu0
  %v386 = vadd.f32 0.0, %v385
  %v387 = vpop.f32.mrb[0].mxu0
  %388 = vmatprep.mubr.f32.mxu0 0.0
  %389 = vmatmul.mubr.f32.gmra.mrb[0].mxu0 %v285
  %v390 = vpop.f32.mrb[0].mxu0
  %v391 = vadd.f32 0.0, %v390
  %v392 = vpop.f32.mrb[0].mxu0
  %393 = vmatprep.mubr.f32.mxu0 0.0
  %394 = vmatmul.mubr.f32.gmra.mrb[0].mxu0 %v288
  %v395 = vpop.f32.mrb[0].mxu0
  %v396 = vadd.f32 0.0, %v395
  %v397 = vpop.f32.mrb[0].mxu0
  %398 = vmatprep.mubr.f32.mxu0 0.0
  %399 = vmatmul.mubr.f32.gmra.mrb[0].mxu0 %v291
  %v400 = vpop.f32.mrb[0].mxu0
  %v401 = vadd.f32 0.0, %v400
  %v402 = vpop.f32.mrb[0].mxu0
  %403 = vmatprep.mubr.f32.mxu0 0.0
  %404 = vmatmul.mubr.f32.gmra.mrb[0].mxu0 %v294
  %v405 = vpop.f32.mrb[0].mxu0
  %v406 = vadd.f32 0.0, %v405
  %v407 = vpop.f32.mrb[0].mxu0
  %408 = vmatprep.mubr.f32.mxu0 0.0
  %409 = vmatmul.mubr.f32.gmra.mrb[0].mxu0 %v297
  %v410 = vpop.f32.mrb[0].mxu0
  %v411 = vadd.f32 0.0, %v410
  %v412 = vpop.f32.mrb[0].mxu0
  %413 = vmatprep.mubr.f32.mxu0 0.0
  %414 = vmatmul.mubr.f32.gmra.mrb[0].mxu0 %v300
  %v415 = vpop.f32.mrb[0].mxu0
  %v416 = vadd.f32 0.0, %v415
  %v417 = vpop.f32.mrb[0].mxu0
  %418 = vmatprep.mubr.f32.mxu0 0.0
  %419 = vmatmul.mubr.f32.gmra.mrb[0].mxu0 %v303
  %v420 = vpop.f32.mrb[0].mxu0
  %v421 = vadd.f32 0.0, %v420
  %v422 = vpop.f32.mrb[0].mxu0
  %423 = vmatprep.mubr.f32.mxu0 0.0
  %424 = vmatmul.mubr.f32.gmra.mrb[0].mxu0 %v306
  %v425 = vpop.f32.mrb[0].mxu0
  %v426 = vadd.f32 0.0, %v425
  %v427 = vpop.f32.mrb[0].mxu0
  %428 = vmatprep.mubr.f32.mxu0 0.0
  %429 = vmatmul.mubr.f32.gmra.mrb[0].mxu0 %v309
  %v430 = vpop.f32.mrb[0].mxu0
  %v431 = vadd.f32 0.0, %v430
  %v432 = vpop.f32.mrb[0].mxu0
  %433 = vmatprep.mubr.f32.mxu0 0.0
  %434 = vmatmul.mubr.f32.gmra.mrb[0].mxu0 %v312
  %v435 = vpop.f32.mrb[0].mxu0
  %v436 = vadd.f32 0.0, %v435
  %v437 = vpop.f32.mrb[0].mxu0
  %438 = vdwg.mxu0
  %445 = vrot.lane.b32.xlu0 %v411, 112
  %v446 = vpop.permute.xlu0 %445
  %447 = vrot.lane.b32.xlu0 %v416, 112
  %v448 = vpop.permute.xlu0 %447
  %449 = vrot.lane.b32.xlu0 %v421, 112
  %v450 = vpop.permute.xlu0 %449
  %451 = vrot.lane.b32.xlu0 %v426, 112
  %v452 = vpop.permute.xlu0 %451
  %453 = vrot.lane.b32.xlu0 %v431, 112
  %v454 = vpop.permute.xlu0 %453
  %455 = vrot.lane.b32.xlu0 %v436, 112
  %v456 = vpop.permute.xlu0 %455
  %v463 = vadd.f32 %v381, %v446
  %v464 = vadd.f32 %v386, %v448
  %v465 = vadd.f32 %v391, %v450
  %v466 = vadd.f32 %v396, %v452
  %v467 = vadd.f32 %v401, %v454
  %v468 = vadd.f32 %v406, %v456
  %v469 = vadd.f32 %v463, %v132
  %v470 = vadd.f32 %v464, %v137
  %v471 = vadd.f32 %v465, %v142
  %v472 = vadd.f32 %v466, %v147
  %v473 = vadd.f32 %v467, %v152
  %v474 = vadd.f32 %v468, %v157
  %vm475 = vcmp.gt.f32.partialorder %v469, 0.0
  %vm476 = vcmp.gt.f32.partialorder %v470, 0.0
  %vm477 = vcmp.gt.f32.partialorder %v471, 0.0
  %vm478 = vcmp.gt.f32.partialorder %v472, 0.0
  %vm479 = vcmp.gt.f32.partialorder %v473, 0.0
  %vm480 = vcmp.gt.f32.partialorder %v474, 0.0
  %v481 = vmul.f32 %v469, 0.2
  %v482 = vmul.f32 %v470, 0.2
  %v483 = vmul.f32 %v471, 0.2
  %v484 = vmul.f32 %v472, 0.2
  %v485 = vmul.f32 %v473, 0.2
  %v486 = vmul.f32 %v474, 0.2
  %v487 = vsel %vm475, %v469, %v481
  %v488 = vsel %vm476, %v470, %v482
  %v489 = vsel %vm477, %v471, %v483
  %v490 = vsel %vm478, %v472, %v484
  %v491 = vsel %vm479, %v473, %v485
  %v492 = vsel %vm480, %v474, %v486
  %v494 = vsel %vm30, %v487, 0
  %v497 = vsel %vm30, %v488, 0
  %v500 = vsel %vm30, %v489, 0
  %v503 = vsel %vm30, %v490, 0
  %v506 = vsel %vm30, %v491, 0
  %v509 = vsel %vm30, %v492, 0
  %511 = vmatprep.subr.mxu0 0.0
  %512 = vmatpush1.msra.mxu0 %v16
  %513 = vmatprep.subr.mxu0 0.0
  %514 = vmatpush1.msra.mxu0 %v17
  %515 = vmatprep.subr.mxu0 0.0
  %516 = vmatpush1.msra.mxu0 0.0
  %517 = vmatprep.subr.mxu0 0.0
  %518 = vmatpush1.msra.mxu0 0.0
  %519 = vmatprep.subr.mxu0 0.0
  %520 = vmatpush1.msra.mxu0 0.0
  %521 = vmatprep.subr.mxu0 0.0
  %522 = vmatpush1.msra.mxu0 0.0
  %523 = vmatprep.subr.mxu0 0.0
  %524 = vmatpush1.msra.mxu0 0.0
  %525 = vmatprep.subr.mxu0 0.0
  %526 = vmatpush1.msra.mxu0 0.0
  %527 = vmatprep.subr.mxu0 0.0
  %528 = vmatpush1.msra.mxu0 0.0
  %529 = vmatprep.subr.mxu0 0.0
  %530 = vmatpush1.msra.mxu0 0.0
  %531 = vmatprep.subr.mxu0 0.0
  %532 = vmatpush1.msra.mxu0 0.0
  %533 = vmatprep.subr.mxu0 0.0
  %534 = vmatpush1.msra.mxu0 0.0
  %535 = vmatprep.subr.mxu0 0.0
  %536 = vmatpush1.msra.mxu0 0.0
  %537 = vmatprep.subr.mxu0 0.0
  %538 = vmatpush1.msra.mxu0 0.0
  %539 = vmatprep.subr.mxu0 0.0
  %540 = vmatpush1.msra.mxu0 0.0
  %541 = vmatprep.subr.mxu0 0.0
  %542 = vmatpush1.msra.mxu0 0.0
  %543 = vmatprep.subr.mxu0 0.0
  %544 = vmatpush1.msra.mxu0 0.0
  %545 = vmatprep.subr.mxu0 0.0
  %546 = vmatpush1.msra.mxu0 0.0
  %547 = vmatprep.subr.mxu0 0.0
  %548 = vmatpush1.msra.mxu0 0.0
  %549 = vmatprep.subr.mxu0 0.0
  %550 = vmatpush1.msra.mxu0 0.0
  %551 = vmatprep.subr.mxu0 0.0
  %552 = vmatpush1.msra.mxu0 0.0
  %553 = vmatprep.subr.mxu0 0.0
  %554 = vmatpush1.msra.mxu0 0.0
  %555 = vmatprep.subr.mxu0 0.0
  %556 = vmatpush1.msra.mxu0 0.0
  %557 = vmatprep.subr.mxu0 0.0
  %558 = vmatpush1.msra.mxu0 0.0
  %559 = vmatprep.subr.mxu0 0.0
  %560 = vmatpush1.msra.mxu0 0.0
  %561 = vmatprep.subr.mxu0 0.0
  %562 = vmatpush1.msra.mxu0 0.0
  %563 = vmatprep.subr.mxu0 0.0
  %564 = vmatpush1.msra.mxu0 0.0
  %565 = vmatprep.subr.mxu0 0.0
  %566 = vmatpush1.msra.mxu0 0.0
  %567 = vmatprep.subr.mxu0 0.0
  %568 = vmatpush1.msra.mxu0 0.0
  %569 = vmatprep.subr.mxu0 0.0
  %570 = vmatpush1.msra.mxu0 0.0
  %571 = vmatprep.subr.mxu0 0.0
  %572 = vmatpush1.msra.mxu0 0.0
  %573 = vmatprep.subr.mxu0 0.0
  %574 = vmatpush1.msra.mxu0 0.0
  %575 = vmatprep.mubr.f32.mxu0 0.0
  %576 = vmatmul.mubr.f32.gmra.mrb[0].mxu0 %v494
  %v577 = vpop.f32.mrb[0].mxu0
  %v578 = vadd.f32 0.0, %v577
  %v579 = vpop.f32.mrb[0].mxu0
  %580 = vmatprep.mubr.f32.mxu0 0.0
  %581 = vmatmul.mubr.f32.gmra.mrb[0].mxu0 %v497
  %v582 = vpop.f32.mrb[0].mxu0
  %v583 = vadd.f32 0.0, %v582
  %v584 = vpop.f32.mrb[0].mxu0
  %585 = vmatprep.mubr.f32.mxu0 0.0
  %586 = vmatmul.mubr.f32.gmra.mrb[0].mxu0 %v500
  %v587 = vpop.f32.mrb[0].mxu0
  %v588 = vadd.f32 0.0, %v587
  %v589 = vpop.f32.mrb[0].mxu0
  %590 = vmatprep.mubr.f32.mxu0 0.0
  %591 = vmatmul.mubr.f32.gmra.mrb[0].mxu0 %v503
  %v592 = vpop.f32.mrb[0].mxu0
  %v593 = vadd.f32 0.0, %v592
  %v594 = vpop.f32.mrb[0].mxu0
  %595 = vmatprep.mubr.f32.mxu0 0.0
  %596 = vmatmul.mubr.f32.gmra.mrb[0].mxu0 %v506
  %v597 = vpop.f32.mrb[0].mxu0
  %v598 = vadd.f32 0.0, %v597
  %v599 = vpop.f32.mrb[0].mxu0
  %600 = vmatprep.mubr.f32.mxu0 0.0
  %601 = vmatmul.mubr.f32.gmra.mrb[0].mxu0 %v509
  %v602 = vpop.f32.mrb[0].mxu0
  %v603 = vadd.f32 0.0, %v602
  %v604 = vpop.f32.mrb[0].mxu0
  %605 = vdwg.mxu0
  %vm606 = vcmask 15360
  %v607 = vsel %vm606, %v578, -inf
  %v608 = vsel %vm606, %v583, -inf
  %v609 = vsel %vm606, %v588, -inf
  %v610 = vsel %vm606, %v593, -inf
  %v611 = vsel %vm606, %v598, -inf
  %v612 = vmax.f32 %v607, %v611
  %v613 = vsel %vm606, %v603, -inf
  %v614 = vmax.f32 %v608, %v613
  %v615 = vmax.f32 %v612, %v614
  %v616 = vmax.f32 %v609, %v610
  %v617 = vmax.f32 %v615, %v616
  %v618 = vrot.slane %v617, 4
  %v619 = vmax.f32 %v617, %v618
  %v620 = vrot.slane %v619, 2
  %v621 = vmax.f32 %v619, %v620
  %v622 = vrot.slane %v621, 1
  %v623 = vmax.f32 %v621, %v622
  %v624 = vsub.f32 %v578, %v623
  %v625 = vsub.f32 %v583, %v623
  %v626 = vsub.f32 %v588, %v623
  %v627 = vsub.f32 %v593, %v623
  %v628 = vsub.f32 %v598, %v623
  %v629 = vsub.f32 %v603, %v623
  %v630 = vmul.f32 %v624, 1.442695
  %v631 = vpow.pop %v630
  %v632 = vmul.f32 %v625, 1.442695
  %v633 = vpow.pop %v632
  %v634 = vmul.f32 %v626, 1.442695
  %v635 = vpow.pop %v634
  %v636 = vmul.f32 %v627, 1.442695
  %v637 = vpow.pop %v636
  %v638 = vmul.f32 %v628, 1.442695
  %v639 = vpow.pop %v638
  %v640 = vmul.f32 %v629, 1.442695
  %v641 = vpow.pop %v640
  %vm642 = vcmask 392192
  %v644 = vsel %vm642, %v262, 0
  %v647 = vsel %vm642, %v263, 0
  %649 = vmatprep.subr.mxu0 0.0
  %650 = vmatpush1.msra.mxu0 %v631
  %651 = vmatprep.subr.mxu0 0.0
  %652 = vmatpush1.msra.mxu0 %v633
  %653 = vmatprep.subr.mxu0 0.0
  %654 = vmatpush1.msra.mxu0 %v635
  %655 = vmatprep.subr.mxu0 0.0
  %656 = vmatpush1.msra.mxu0 %v637
  %657 = vmatprep.subr.mxu0 0.0
  %658 = vmatpush1.msra.mxu0 %v639
  %659 = vmatprep.subr.mxu0 0.0
  %660 = vmatpush1.msra.mxu0 %v641
  %661 = vmatprep.subr.mxu0 0.0
  %662 = vmatpush1.msra.mxu0 0.0
  %663 = vmatprep.subr.mxu0 0.0
  %664 = vmatpush1.msra.mxu0 0.0
  %665 = vmatprep.subr.mxu0 0.0
  %666 = vmatpush1.msra.mxu0 0.0
  %667 = vmatprep.subr.mxu0 0.0
  %668 = vmatpush1.msra.mxu0 0.0
  %669 = vmatprep.subr.mxu0 0.0
  %670 = vmatpush1.msra.mxu0 0.0
  %671 = vmatprep.subr.mxu0 0.0
  %672 = vmatpush1.msra.mxu0 0.0
  %673 = vmatprep.subr.mxu0 0.0
  %674 = vmatpush1.msra.mxu0 0.0
  %675 = vmatprep.subr.mxu0 0.0
  %676 = vmatpush1.msra.mxu0 0.0
  %677 = vmatprep.subr.mxu0 0.0
  %678 = vmatpush1.msra.mxu0 0.0
  %679 = vmatprep.subr.mxu0 0.0
  %680 = vmatpush1.msra.mxu0 0.0
  %681 = vmatprep.subr.mxu0 0.0
  %682 = vmatpush1.msra.mxu0 0.0
  %683 = vmatprep.subr.mxu0 0.0
  %684 = vmatpush1.msra.mxu0 0.0
  %685 = vmatprep.subr.mxu0 0.0
  %686 = vmatpush1.msra.mxu0 0.0
  %687 = vmatprep.subr.mxu0 0.0
  %688 = vmatpush1.msra.mxu0 0.0
  %689 = vmatprep.subr.mxu0 0.0
  %690 = vmatpush1.msra.mxu0 0.0
  %691 = vmatprep.subr.mxu0 0.0
  %692 = vmatpush1.msra.mxu0 0.0
  %693 = vmatprep.subr.mxu0 0.0
  %694 = vmatpush1.msra.mxu0 0.0
  %695 = vmatprep.subr.mxu0 0.0
  %696 = vmatpush1.msra.mxu0 0.0
  %697 = vmatprep.subr.mxu0 0.0
  %698 = vmatpush1.msra.mxu0 0.0
  %699 = vmatprep.subr.mxu0 0.0
  %700 = vmatpush1.msra.mxu0 0.0
  %701 = vmatprep.subr.mxu0 0.0
  %702 = vmatpush1.msra.mxu0 0.0
  %703 = vmatprep.subr.mxu0 0.0
  %704 = vmatpush1.msra.mxu0 0.0
  %705 = vmatprep.subr.mxu0 0.0
  %706 = vmatpush1.msra.mxu0 0.0
  %707 = vmatprep.subr.mxu0 0.0
  %708 = vmatpush1.msra.mxu0 0.0
  %709 = vmatprep.subr.mxu0 0.0
  %710 = vmatpush1.msra.mxu0 0.0
  %711 = vmatprep.subr.mxu0 0.0
  %712 = vmatpush1.msra.mxu0 0.0
  %713 = vmatprep.mubr.f32.mxu0 0.0
  %714 = vmatmul.mubr.f32.gmra.mrb[0].mxu0 %v644
  %v715 = vpop.f32.mrb[0].mxu0
  %v716 = vadd.f32 0.0, %v715
  %v717 = vpop.f32.mrb[0].mxu0
  %718 = vmatprep.mubr.f32.mxu0 0.0
  %719 = vmatmul.mubr.f32.gmra.mrb[0].mxu0 %v647
  %v720 = vpop.f32.mrb[0].mxu0
  %v721 = vadd.f32 0.0, %v720
  %v722 = vpop.f32.mrb[0].mxu0
  %723 = vdwg.mxu0
  %724 = vmatprep.subr.mxu0 0.0
  %725 = vmatpush1.msra.mxu0 %v716
  %726 = vmatprep.subr.mxu0 0.0
  %727 = vmatpush1.msra.mxu0 %v721
  %728 = vmatprep.subr.mxu0 0.0
  %729 = vmatpush1.msra.mxu0 0.0
  %730 = vmatprep.subr.mxu0 0.0
  %731 = vmatpush1.msra.mxu0 0.0
  %732 = vmatprep.subr.mxu0 0.0
  %733 = vmatpush1.msra.mxu0 0.0
  %734 = vmatprep.subr.mxu0 0.0
  %735 = vmatpush1.msra.mxu0 0.0
  %736 = vmatprep.subr.mxu0 0.0
  %737 = vmatpush1.msra.mxu0 0.0
  %738 = vmatprep.subr.mxu0 0.0
  %739 = vmatpush1.msra.mxu0 0.0
  %740 = vmatprep.subr.mxu0 0.0
  %741 = vmatpush1.msra.mxu0 0.0
  %742 = vmatprep.subr.mxu0 0.0
  %743 = vmatpush1.msra.mxu0 0.0
  %744 = vmatprep.subr.mxu0 0.0
  %745 = vmatpush1.msra.mxu0 0.0
  %746 = vmatprep.subr.mxu0 0.0
  %747 = vmatpush1.msra.mxu0 0.0
  %748 = vmatprep.subr.mxu0 0.0
  %749 = vmatpush1.msra.mxu0 0.0
  %750 = vmatprep.subr.mxu0 0.0
  %751 = vmatpush1.msra.mxu0 0.0
  %752 = vmatprep.subr.mxu0 0.0
  %753 = vmatpush1.msra.mxu0 0.0
  %754 = vmatprep.subr.mxu0 0.0
  %755 = vmatpush1.msra.mxu0 0.0
  %756 = vmatprep.subr.mxu0 0.0
  %757 = vmatpush1.msra.mxu0 0.0
  %758 = vmatprep.subr.mxu0 0.0
  %759 = vmatpush1.msra.mxu0 0.0
  %760 = vmatprep.subr.mxu0 0.0
  %761 = vmatpush1.msra.mxu0 0.0
  %762 = vmatprep.subr.mxu0 0.0
  %763 = vmatpush1.msra.mxu0 0.0
  %764 = vmatprep.subr.mxu0 0.0
  %765 = vmatpush1.msra.mxu0 0.0
  %766 = vmatprep.subr.mxu0 0.0
  %767 = vmatpush1.msra.mxu0 0.0
  %768 = vmatprep.subr.mxu0 0.0
  %769 = vmatpush1.msra.mxu0 0.0
  %770 = vmatprep.subr.mxu0 0.0
  %771 = vmatpush1.msra.mxu0 0.0
  %772 = vmatprep.subr.mxu0 0.0
  %773 = vmatpush1.msra.mxu0 0.0
  %774 = vmatprep.subr.mxu0 0.0
  %775 = vmatpush1.msra.mxu0 0.0
  %776 = vmatprep.subr.mxu0 0.0
  %777 = vmatpush1.msra.mxu0 0.0
  %778 = vmatprep.subr.mxu0 0.0
  %779 = vmatpush1.msra.mxu0 0.0
  %780 = vmatprep.subr.mxu0 0.0
  %781 = vmatpush1.msra.mxu0 0.0
  %782 = vmatprep.subr.mxu0 0.0
  %783 = vmatpush1.msra.mxu0 0.0
  %784 = vmatprep.subr.mxu0 0.0
  %785 = vmatpush1.msra.mxu0 0.0
  %786 = vmatprep.subr.mxu0 0.0
  %787 = vmatpush1.msra.mxu0 0.0
  %788 = vmatprep.mubr.f32.mxu0 0.0
  %789 = vmatmul.mubr.f32.gmra.mrb[0].mxu0 %v297
  %v790 = vpop.f32.mrb[0].mxu0
  %v791 = vadd.f32 0.0, %v790
  %v792 = vpop.f32.mrb[0].mxu0
  %793 = vmatprep.mubr.f32.mxu0 0.0
  %794 = vmatmul.mubr.f32.gmra.mrb[0].mxu0 %v300
  %v795 = vpop.f32.mrb[0].mxu0
  %v796 = vadd.f32 0.0, %v795
  %v797 = vpop.f32.mrb[0].mxu0
  %798 = vmatprep.mubr.f32.mxu0 0.0
  %799 = vmatmul.mubr.f32.gmra.mrb[0].mxu0 %v303
  %v800 = vpop.f32.mrb[0].mxu0
  %v801 = vadd.f32 0.0, %v800
  %v802 = vpop.f32.mrb[0].mxu0
  %803 = vmatprep.mubr.f32.mxu0 0.0
  %804 = vmatmul.mubr.f32.gmra.mrb[0].mxu0 %v306
  %v805 = vpop.f32.mrb[0].mxu0
  %v806 = vadd.f32 0.0, %v805
  %v807 = vpop.f32.mrb[0].mxu0
  %808 = vmatprep.mubr.f32.mxu0 0.0
  %809 = vmatmul.mubr.f32.gmra.mrb[0].mxu0 %v309
  %v810 = vpop.f32.mrb[0].mxu0
  %v811 = vadd.f32 0.0, %v810
  %v812 = vpop.f32.mrb[0].mxu0
  %813 = vmatprep.mubr.f32.mxu0 0.0
  %814 = vmatmul.mubr.f32.gmra.mrb[0].mxu0 %v312
  %v815 = vpop.f32.mrb[0].mxu0
  %v816 = vadd.f32 0.0, %v815
  %v817 = vpop.f32.mrb[0].mxu0
  %818 = vdwg.mxu0
  %v819 = vmax.f32 %v791, 1.1754944e-38
  %v820 = vmax.f32 %v796, 1.1754944e-38
  %v821 = vmax.f32 %v801, 1.1754944e-38
  %v822 = vmax.f32 %v806, 1.1754944e-38
  %v823 = vmax.f32 %v811, 1.1754944e-38
  %v824 = vmax.f32 %v816, 1.1754944e-38
  %v825 = vrcp.pop %v819
  %v826 = vmul.f32 %v631, %v825
  %v827 = vrcp.pop %v820
  %v828 = vmul.f32 %v633, %v827
  %v829 = vrcp.pop %v821
  %v830 = vmul.f32 %v635, %v829
  %v831 = vrcp.pop %v822
  %v832 = vmul.f32 %v637, %v831
  %v833 = vrcp.pop %v823
  %v834 = vmul.f32 %v639, %v833
  %v835 = vrcp.pop %v824
  %v836 = vmul.f32 %v641, %v835
  %v838 = vsel %vm606, %v826, 0
  %v841 = vsel %vm606, %v828, 0
  %v844 = vsel %vm606, %v830, 0
  %v847 = vsel %vm606, %v832, 0
  %v850 = vsel %vm606, %v834, 0
  %v853 = vsel %vm606, %v836, 0
  %vm855 = vcmask 1041408
  %v857 = vsel %vm855, %v18, 0
  %859 = vmatprep.subr.mxu0 0.0
  %860 = vmatpush1.msra.mxu0 %v857
  %861 = vmatprep.subr.mxu0 0.0
  %862 = vmatpush1.msra.mxu0 0.0
  %863 = vmatprep.subr.mxu0 0.0
  %864 = vmatpush1.msra.mxu0 0.0
  %865 = vmatprep.subr.mxu0 0.0
  %866 = vmatpush1.msra.mxu0 0.0
  %867 = vmatprep.subr.mxu0 0.0
  %868 = vmatpush1.msra.mxu0 0.0
  %869 = vmatprep.subr.mxu0 0.0
  %870 = vmatpush1.msra.mxu0 0.0
  %871 = vmatprep.subr.mxu0 0.0
  %872 = vmatpush1.msra.mxu0 0.0
  %873 = vmatprep.subr.mxu0 0.0
  %874 = vmatpush1.msra.mxu0 0.0
  %875 = vmatprep.subr.mxu0 0.0
  %876 = vmatpush1.msra.mxu0 0.0
  %877 = vmatprep.subr.mxu0 0.0
  %878 = vmatpush1.msra.mxu0 0.0
  %879 = vmatprep.subr.mxu0 0.0
  %880 = vmatpush1.msra.mxu0 0.0
  %881 = vmatprep.subr.mxu0 0.0
  %882 = vmatpush1.msra.mxu0 0.0
  %883 = vmatprep.subr.mxu0 0.0
  %884 = vmatpush1.msra.mxu0 0.0
  %885 = vmatprep.subr.mxu0 0.0
  %886 = vmatpush1.msra.mxu0 0.0
  %887 = vmatprep.subr.mxu0 0.0
  %888 = vmatpush1.msra.mxu0 0.0
  %889 = vmatprep.subr.mxu0 0.0
  %890 = vmatpush1.msra.mxu0 0.0
  %891 = vmatprep.subr.mxu0 0.0
  %892 = vmatpush1.msra.mxu0 0.0
  %893 = vmatprep.subr.mxu0 0.0
  %894 = vmatpush1.msra.mxu0 0.0
  %895 = vmatprep.subr.mxu0 0.0
  %896 = vmatpush1.msra.mxu0 0.0
  %897 = vmatprep.subr.mxu0 0.0
  %898 = vmatpush1.msra.mxu0 0.0
  %899 = vmatprep.subr.mxu0 0.0
  %900 = vmatpush1.msra.mxu0 0.0
  %901 = vmatprep.subr.mxu0 0.0
  %902 = vmatpush1.msra.mxu0 0.0
  %903 = vmatprep.subr.mxu0 0.0
  %904 = vmatpush1.msra.mxu0 0.0
  %905 = vmatprep.subr.mxu0 0.0
  %906 = vmatpush1.msra.mxu0 0.0
  %907 = vmatprep.subr.mxu0 0.0
  %908 = vmatpush1.msra.mxu0 0.0
  %909 = vmatprep.subr.mxu0 0.0
  %910 = vmatpush1.msra.mxu0 0.0
  %911 = vmatprep.subr.mxu0 0.0
  %912 = vmatpush1.msra.mxu0 0.0
  %913 = vmatprep.subr.mxu0 0.0
  %914 = vmatpush1.msra.mxu0 0.0
  %915 = vmatprep.subr.mxu0 0.0
  %916 = vmatpush1.msra.mxu0 0.0
  %917 = vmatprep.subr.mxu0 0.0
  %918 = vmatpush1.msra.mxu0 0.0
  %919 = vmatprep.subr.mxu0 0.0
  %920 = vmatpush1.msra.mxu0 0.0
  %921 = vmatprep.subr.mxu0 0.0
  %922 = vmatpush1.msra.mxu0 0.0
  %923 = vmatprep.mubr.f32.mxu0 0.0
  %924 = vmatmul.mubr.f32.gmra.mrb[0].mxu0 %v838
  %v925 = vpop.f32.mrb[0].mxu0
  %v926 = vadd.f32 0.0, %v925
  %v927 = vpop.f32.mrb[0].mxu0
  %928 = vmatprep.mubr.f32.mxu0 0.0
  %929 = vmatmul.mubr.f32.gmra.mrb[0].mxu0 %v841
  %v930 = vpop.f32.mrb[0].mxu0
  %v931 = vadd.f32 0.0, %v930
  %v932 = vpop.f32.mrb[0].mxu0
  %933 = vmatprep.mubr.f32.mxu0 0.0
  %934 = vmatmul.mubr.f32.gmra.mrb[0].mxu0 %v844
  %v935 = vpop.f32.mrb[0].mxu0
  %v936 = vadd.f32 0.0, %v935
  %v937 = vpop.f32.mrb[0].mxu0
  %938 = vmatprep.mubr.f32.mxu0 0.0
  %939 = vmatmul.mubr.f32.gmra.mrb[0].mxu0 %v847
  %v940 = vpop.f32.mrb[0].mxu0
  %v941 = vadd.f32 0.0, %v940
  %v942 = vpop.f32.mrb[0].mxu0
  %943 = vmatprep.mubr.f32.mxu0 0.0
  %944 = vmatmul.mubr.f32.gmra.mrb[0].mxu0 %v850
  %v945 = vpop.f32.mrb[0].mxu0
  %v946 = vadd.f32 0.0, %v945
  %v947 = vpop.f32.mrb[0].mxu0
  %948 = vmatprep.mubr.f32.mxu0 0.0
  %949 = vmatmul.mubr.f32.gmra.mrb[0].mxu0 %v853
  %v950 = vpop.f32.mrb[0].mxu0
  %v951 = vadd.f32 0.0, %v950
  %v952 = vpop.f32.mrb[0].mxu0
  %953 = vdwg.mxu0
  %v954 = vmul.f32 %v381, %v926
  %v955 = vmul.f32 %v386, %v931
  %v956 = vmul.f32 %v391, %v936
  %v957 = vmul.f32 %v396, %v941
  %v958 = vmul.f32 %v401, %v946
  %v959 = vmul.f32 %v406, %v951
  %960 = vmatprep.subr.mxu0 0.0
  %961 = vmatpush1.msra.mxu0 %v954
  %962 = vmatprep.subr.mxu0 0.0
  %963 = vmatpush1.msra.mxu0 %v955
  %964 = vmatprep.subr.mxu0 0.0
  %965 = vmatpush1.msra.mxu0 %v956
  %966 = vmatprep.subr.mxu0 0.0
  %967 = vmatpush1.msra.mxu0 %v957
  %968 = vmatprep.subr.mxu0 0.0
  %969 = vmatpush1.msra.mxu0 %v958
  %970 = vmatprep.subr.mxu0 0.0
  %971 = vmatpush1.msra.mxu0 %v959
  %972 = vmatprep.subr.mxu0 0.0
  %973 = vmatpush1.msra.mxu0 0.0
  %974 = vmatprep.subr.mxu0 0.0
  %975 = vmatpush1.msra.mxu0 0.0
  %976 = vmatprep.subr.mxu0 0.0
  %977 = vmatpush1.msra.mxu0 0.0
  %978 = vmatprep.subr.mxu0 0.0
  %979 = vmatpush1.msra.mxu0 0.0
  %980 = vmatprep.subr.mxu0 0.0
  %981 = vmatpush1.msra.mxu0 0.0
  %982 = vmatprep.subr.mxu0 0.0
  %983 = vmatpush1.msra.mxu0 0.0
  %984 = vmatprep.subr.mxu0 0.0
  %985 = vmatpush1.msra.mxu0 0.0
  %986 = vmatprep.subr.mxu0 0.0
  %987 = vmatpush1.msra.mxu0 0.0
  %988 = vmatprep.subr.mxu0 0.0
  %989 = vmatpush1.msra.mxu0 0.0
  %990 = vmatprep.subr.mxu0 0.0
  %991 = vmatpush1.msra.mxu0 0.0
  %992 = vmatprep.subr.mxu0 0.0
  %993 = vmatpush1.msra.mxu0 0.0
  %994 = vmatprep.subr.mxu0 0.0
  %995 = vmatpush1.msra.mxu0 0.0
  %996 = vmatprep.subr.mxu0 0.0
  %997 = vmatpush1.msra.mxu0 0.0
  %998 = vmatprep.subr.mxu0 0.0
  %999 = vmatpush1.msra.mxu0 0.0
  %1000 = vmatprep.subr.mxu0 0.0
  %1001 = vmatpush1.msra.mxu0 0.0
  %1002 = vmatprep.subr.mxu0 0.0
  %1003 = vmatpush1.msra.mxu0 0.0
  %1004 = vmatprep.subr.mxu0 0.0
  %1005 = vmatpush1.msra.mxu0 0.0
  %1006 = vmatprep.subr.mxu0 0.0
  %1007 = vmatpush1.msra.mxu0 0.0
  %1008 = vmatprep.subr.mxu0 0.0
  %1009 = vmatpush1.msra.mxu0 0.0
  %1010 = vmatprep.subr.mxu0 0.0
  %1011 = vmatpush1.msra.mxu0 0.0
  %1012 = vmatprep.subr.mxu0 0.0
  %1013 = vmatpush1.msra.mxu0 0.0
  %1014 = vmatprep.subr.mxu0 0.0
  %1015 = vmatpush1.msra.mxu0 0.0
  %1016 = vmatprep.subr.mxu0 0.0
  %1017 = vmatpush1.msra.mxu0 0.0
  %1018 = vmatprep.subr.mxu0 0.0
  %1019 = vmatpush1.msra.mxu0 0.0
  %1020 = vmatprep.subr.mxu0 0.0
  %1021 = vmatpush1.msra.mxu0 0.0
  %1022 = vmatprep.subr.mxu0 0.0
  %1023 = vmatpush1.msra.mxu0 0.0
  %1024 = vmatprep.mubr.f32.mxu0 0.0
  %1025 = vmatmul.mubr.f32.gmra.mrb[0].mxu0 %v644
  %v1026 = vpop.f32.mrb[0].mxu0
  %v1027 = vadd.f32 0.0, %v1026
  %v1028 = vpop.f32.mrb[0].mxu0
  %1029 = vmatprep.mubr.f32.mxu0 0.0
  %1030 = vmatmul.mubr.f32.gmra.mrb[0].mxu0 %v647
  %v1031 = vpop.f32.mrb[0].mxu0
  %v1032 = vadd.f32 0.0, %v1031
  %v1033 = vpop.f32.mrb[0].mxu0
  %1034 = vdwg.mxu0
  %v1035 = vlaneseq
  %v1036 = vshrl.u32 %v1035, 7
  %v1037 = vsub.s32 0, %v1036
  %v1038 = vrot.slane %v21, %v1037
  %v1040 = vsel %vm30, %v1027, 0
  %v1043 = vsel %vm30, %v1032, 0
  %1045 = vmatprep.subr.mxu0 0.0
  %1046 = vmatpush1.msra.mxu0 %v19
  %1047 = vmatprep.subr.mxu0 0.0
  %1048 = vmatpush1.msra.mxu0 %v20
  %1049 = vmatprep.subr.mxu0 0.0
  %1050 = vmatpush1.msra.mxu0 0.0
  %1051 = vmatprep.subr.mxu0 0.0
  %1052 = vmatpush1.msra.mxu0 0.0
  %1053 = vmatprep.subr.mxu0 0.0
  %1054 = vmatpush1.msra.mxu0 0.0
  %1055 = vmatprep.subr.mxu0 0.0
  %1056 = vmatpush1.msra.mxu0 0.0
  %1057 = vmatprep.subr.mxu0 0.0
  %1058 = vmatpush1.msra.mxu0 0.0
  %1059 = vmatprep.subr.mxu0 0.0
  %1060 = vmatpush1.msra.mxu0 0.0
  %1061 = vmatprep.subr.mxu0 0.0
  %1062 = vmatpush1.msra.mxu0 0.0
  %1063 = vmatprep.subr.mxu0 0.0
  %1064 = vmatpush1.msra.mxu0 0.0
  %1065 = vmatprep.subr.mxu0 0.0
  %1066 = vmatpush1.msra.mxu0 0.0
  %1067 = vmatprep.subr.mxu0 0.0
  %1068 = vmatpush1.msra.mxu0 0.0
  %1069 = vmatprep.subr.mxu0 0.0
  %1070 = vmatpush1.msra.mxu0 0.0
  %1071 = vmatprep.subr.mxu0 0.0
  %1072 = vmatpush1.msra.mxu0 0.0
  %1073 = vmatprep.subr.mxu0 0.0
  %1074 = vmatpush1.msra.mxu0 0.0
  %1075 = vmatprep.subr.mxu0 0.0
  %1076 = vmatpush1.msra.mxu0 0.0
  %1077 = vmatprep.subr.mxu0 0.0
  %1078 = vmatpush1.msra.mxu0 0.0
  %1079 = vmatprep.subr.mxu0 0.0
  %1080 = vmatpush1.msra.mxu0 0.0
  %1081 = vmatprep.subr.mxu0 0.0
  %1082 = vmatpush1.msra.mxu0 0.0
  %1083 = vmatprep.subr.mxu0 0.0
  %1084 = vmatpush1.msra.mxu0 0.0
  %1085 = vmatprep.subr.mxu0 0.0
  %1086 = vmatpush1.msra.mxu0 0.0
  %1087 = vmatprep.subr.mxu0 0.0
  %1088 = vmatpush1.msra.mxu0 0.0
  %1089 = vmatprep.subr.mxu0 0.0
  %1090 = vmatpush1.msra.mxu0 0.0
  %1091 = vmatprep.subr.mxu0 0.0
  %1092 = vmatpush1.msra.mxu0 0.0
  %1093 = vmatprep.subr.mxu0 0.0
  %1094 = vmatpush1.msra.mxu0 0.0
  %1095 = vmatprep.subr.mxu0 0.0
  %1096 = vmatpush1.msra.mxu0 0.0
  %1097 = vmatprep.subr.mxu0 0.0
  %1098 = vmatpush1.msra.mxu0 0.0
  %1099 = vmatprep.subr.mxu0 0.0
  %1100 = vmatpush1.msra.mxu0 0.0
  %1101 = vmatprep.subr.mxu0 0.0
  %1102 = vmatpush1.msra.mxu0 0.0
  %1103 = vmatprep.subr.mxu0 0.0
  %1104 = vmatpush1.msra.mxu0 0.0
  %1105 = vmatprep.subr.mxu0 0.0
  %1106 = vmatpush1.msra.mxu0 0.0
  %1107 = vmatprep.subr.mxu0 0.0
  %1108 = vmatpush1.msra.mxu0 0.0
  %1109 = vmatprep.mubr.f32.mxu0 0.0
  %1110 = vmatmul.mubr.f32.gmra.mrb[0].mxu0 %v1040
  %v1111 = vpop.f32.mrb[0].mxu0
  %v1112 = vadd.f32 %v1038, %v1111
  %v1113 = vpop.f32.mrb[0].mxu0
  %1114 = vmatprep.mubr.f32.mxu0 0.0
  %1115 = vmatmul.mubr.f32.gmra.mrb[0].mxu0 %v1043
  %v1116 = vpop.f32.mrb[0].mxu0
  %v1117 = vadd.f32 %v1038, %v1116
  %v1118 = vpop.f32.mrb[0].mxu0
  %1119 = vdwg.mxu0
  %vm1120 = vcmask 64512
  %1121 = vst.msk [vmem:[%s3] sm:$0xff] %vm1120, %v1112
  %1122 = vst.msk [vmem:[%s3 + $0x8] sm:$0xff] %vm1120, %v1117
  // Predicated region
  $region14: #{gatev2conv_forward.1} parent=0 // pred_check
    _
  $region15: #{gatev2conv_forward.1} parent=0 // pred_check_branch
    %1124 = sbr.rel (0) target = $region17
  $region16: #{gatev2conv_forward.1} parent=0 // pred_region
    _
  $region17: #{gatev2conv_forward.1} parent=0 // pred_fallthru
    _
  // Predicated region
  $region18: #{gatev2conv_forward.1} parent=0 // pred_check
    _
  $region19: #{gatev2conv_forward.1} parent=0 // pred_check_branch
    %1126 = sbr.rel (0) target = $region21
  $region20: #{gatev2conv_forward.1} parent=0 // pred_region
    _
  $region21: #{gatev2conv_forward.1} parent=0 // pred_fallthru
    _

</llo_original>
